<compile_context>
chip_gen: v6e
topology: v6e:2x2x1
jax: 0.10.0
libtpu: 0.0.40
codegen_flags: <defaults>
</compile_context>

<pallas_src>
import functools

import jax
import jax.numpy as jnp
from jax.experimental import pallas as pl
from jax.experimental.pallas import tpu as pltpu


# ----------------------------- kernels ------------------------------------


def _layernorm_kernel(x_ref, g_ref, b_ref, o_ref, *, eps):
    """y = a_2 * (x - mean) / (std + eps) + b_2, std unbiased (ddof=1, torch)."""
    x = x_ref[...].astype(jnp.float32)                  # (rows_tile, D)
    d = x.shape[-1]
    inv_d = jnp.float32(1.0 / d)
    # One pass over the tile: mean and E[x^2] together, Bessel correction after.
    mean = jnp.sum(x, axis=-1, keepdims=True) * inv_d
    meansq = jnp.sum(x * x, axis=-1, keepdims=True) * inv_d
    var = jnp.maximum(meansq - mean * mean, 0.0) * jnp.float32(d / max(d - 1, 1))
    std = jnp.sqrt(var)
    # Per-row reciprocal of the (rows_tile, 1) column, then a single multiply,
    # instead of dividing the whole (rows_tile, D) tile.  approx=False keeps
    # exact parity with the f32 reference; flip to approx=True (EUP slot, ~free)
    # for bf16 production activations.
    inv = pl.reciprocal(std + jnp.float32(eps), approx=False)
    y = (x - mean) * inv * g_ref[...] + b_ref[...]      # gamma/beta stay f32
    o_ref[...] = y.astype(o_ref.dtype)


def _residual_add_kernel(x_ref, s_ref, o_ref):
    """Eval mode / p == 0: out = x + sublayer_out."""
    o_ref[...] = x_ref[...] + s_ref[...]


def _residual_dropout_rng_kernel(x_ref, s_ref, seed_ref, o_ref, *,
                                 keep_prob, threshold):
    """Training mode: out = x + where(U < keep_prob, s / keep_prob, 0).

    The keep mask is generated on-chip: uint32 random bits compared against a
    precomputed uint32 threshold = keep_prob * 2^32, so no mask tensor is
    streamed from HBM.  Seeded per grid step so every tile gets a fresh stream.
    """
    pltpu.prng_seed(seed_ref[0], pl.program_id(0))
    bits = pltpu.bitcast(pltpu.prng_random_bits(x_ref.shape), jnp.uint32)
    keep = bits < jnp.uint32(threshold)
    scale = jnp.asarray(1.0 / keep_prob, dtype=s_ref.dtype)
    o_ref[...] = x_ref[...] + jnp.where(keep, s_ref[...] * scale,
                                        jnp.zeros_like(s_ref[...]))


def _residual_dropout_mask_kernel(x_ref, s_ref, m_ref, o_ref, *, keep_prob):
    """Fallback (non-TPU / interpret): host-provided uint8 keep mask."""
    keep = m_ref[...] != 0
    scale = jnp.asarray(1.0 / keep_prob, dtype=s_ref.dtype)
    o_ref[...] = x_ref[...] + jnp.where(keep, s_ref[...] * scale,
                                        jnp.zeros_like(s_ref[...]))


# ----------------------------- tiling helpers ------------------------------


def _round_up(v, m):
    return ((v + m - 1) // m) * m


def _vmem_budget_bytes():
    """Per-kernel VMEM budget, generation-aware with headroom."""
    cap = None
    try:
        info = pltpu.get_tpu_info()
        cap = getattr(info, "vmem_capacity_bytes", None)
    except Exception:
        cap = None
    if not cap:
        cap = 64 << 20              # conservative: v7x has the smallest VMEM
    # ~60% of physical, hard-capped at 48 MiB (fits v7x's 64 MiB with headroom;
    # well inside v5e/v6e's 128 MiB).
    return int(min((cap * 3) // 5, 48 << 20))


def _row_tile(rows, row_bytes_all_streams, vmem_budget):
    """Fixed row tile (multiple of 8) for a pl.cdiv grid with a ragged tail."""
    if rows <= 8:
        return rows                  # block equals full dim -> always legal
    usable = (vmem_budget * 3) // 4                    # leave compiler headroom
    tile = usable // max(2 * row_bytes_all_streams, 1)  # 2x for double-buffering
    tile = max(8, (tile // 8) * 8)
    # Keep >= 2 grid steps so a "parallel" grid axis can split across v7x's
    # two TensorCores (neutral on single-TC v5e/v6e).
    half = _round_up(pl.cdiv(rows, 2), 8)
    return min(tile, half)


def _lane_dense_shape(total, r, d):
    """(rows, cols) view with cols % 128 == 0 AND rows % 8 == 0 when possible."""
    if d % 128 == 0:
        return r, d                  # already lane-dense; keep natural layout
    for cols in (2048, 1024, 512, 256, 128):
        if total % cols == 0:
            rows = total // cols
            if rows >= 8 and rows % 8 == 0:
                return rows, cols
    return r, d                      # small/awkward tensors: natural layout


def _compiler_params(vmem_budget):
    # No cross-step carry in any kernel -> parallel grid axis; explicit VMEM
    # limit (raises v5e's 16 MiB default, stays inside v7x's 64 MiB physical).
    return pltpu.CompilerParams(dimension_semantics=("parallel",),
                                vmem_limit_bytes=int(vmem_budget))


# ----------------------------- pallas wrappers ------------------------------


def layernorm_pallas(x2, gamma, beta, *, eps):
    """x2: (R, D); gamma/beta: (D,) kept in f32. Row-wise LayerNorm."""
    r, d = x2.shape
    budget = _vmem_budget_bytes()
    # streams: x in, out (x dtype) + f32 working copy of the tile
    row_bytes = d * (2 * x2.dtype.itemsize + 4)
    tile = _row_tile(r, row_bytes, budget)
    grid = (pl.cdiv(r, tile),)
    g2 = gamma.reshape(1, d).astype(jnp.float32)
    b2 = beta.reshape(1, d).astype(jnp.float32)
    kernel = functools.partial(_layernorm_kernel, eps=float(eps))
    return pl.pallas_call(
        kernel,
        out_shape=jax.ShapeDtypeStruct((r, d), x2.dtype),
        grid=grid,
        in_specs=[
            pl.BlockSpec((tile, d), lambda i: (i, 0)),
            pl.BlockSpec((1, d), lambda i: (0, 0)),   # constant block, f32
            pl.BlockSpec((1, d), lambda i: (0, 0)),
        ],
        out_specs=pl.BlockSpec((tile, d), lambda i: (i, 0)),
        compiler_params=_compiler_params(budget),
    )(x2, g2, b2)


def residual_add_pallas(x_e, s_e):
    r, c = x_e.shape
    budget = _vmem_budget_bytes()
    row_bytes = c * (2 * x_e.dtype.itemsize + s_e.dtype.itemsize)
    tile = _row_tile(r, row_bytes, budget)
    grid = (pl.cdiv(r, tile),)
    spec = pl.BlockSpec((tile, c), lambda i: (i, 0))
    return pl.pallas_call(
        _residual_add_kernel,
        out_shape=jax.ShapeDtypeStruct((r, c), x_e.dtype),
        grid=grid,
        in_specs=[spec, spec],
        out_specs=spec,
        input_output_aliases={0: 0},
        compiler_params=_compiler_params(budget),
    )(x_e, s_e)


def residual_dropout_pallas(x_e, s_e, seed, keep_prob):
    """In-kernel PRNG dropout: no mask tensor streamed from HBM."""
    r, c = x_e.shape
    budget = _vmem_budget_bytes()
    # streams: x, s, out (+ u32 random-bits block generated in-kernel)
    row_bytes = c * (2 * x_e.dtype.itemsize + s_e.dtype.itemsize + 4)
    tile = _row_tile(r, row_bytes, budget)
    grid = (pl.cdiv(r, tile),)
    spec = pl.BlockSpec((tile, c), lambda i: (i, 0))
    threshold = min(int(round(keep_prob * 4294967296.0)), 4294967295)
    kernel = functools.partial(_residual_dropout_rng_kernel,
                               keep_prob=float(keep_prob), threshold=threshold)
    return pl.pallas_call(
        kernel,
        out_shape=jax.ShapeDtypeStruct((r, c), x_e.dtype),
        grid=grid,
        in_specs=[spec, spec,
                  pl.BlockSpec(memory_space=pltpu.MemorySpace.SMEM)],
        out_specs=spec,
        input_output_aliases={0: 0},
        compiler_params=_compiler_params(budget),
    )(x_e, s_e, seed)


def residual_dropout_mask_pallas(x_e, s_e, mask_u8, keep_prob):
    """Fallback path: host-side uint8 keep mask (interpret / non-TPU tests)."""
    r, c = x_e.shape
    budget = _vmem_budget_bytes()
    row_bytes = c * (2 * x_e.dtype.itemsize + s_e.dtype.itemsize + 1)
    tile = _row_tile(r, row_bytes, budget)
    grid = (pl.cdiv(r, tile),)
    spec = pl.BlockSpec((tile, c), lambda i: (i, 0))
    kernel = functools.partial(_residual_dropout_mask_kernel,
                               keep_prob=float(keep_prob))
    return pl.pallas_call(
        kernel,
        out_shape=jax.ShapeDtypeStruct((r, c), x_e.dtype),
        grid=grid,
        in_specs=[spec, spec, spec],
        out_specs=spec,
        input_output_aliases={0: 0},
        compiler_params=_compiler_params(budget),
    )(x_e, s_e, mask_u8)


# ----------------------------- module forward -------------------------------


def sublayer_connection_forward(x, gamma, beta, sublayer, *, p, eps=1e-6,
                                training=True, dropout_key=None,
                                use_device_rng=None):
    """x: (B, S, D). Returns x + dropout(sublayer(LayerNorm(x)))."""
    b, s, d = x.shape
    r = b * s
    x2 = x.reshape(r, d)

    # ---- LayerNorm (Pallas) ----
    normed = layernorm_pallas(x2, gamma, beta, eps=eps).reshape(b, s, d)

    # TODO(synk): `sublayer` is an arbitrary user callable in the PyTorch
    # module, so it runs as plain JAX between the two Pallas kernels; when its
    # structure is known (FFN / attention projection) LN and residual+dropout
    # should instead be fused into its first/last matmuls to kill two full
    # HBM round-trips of the activation.
    sub_out = sublayer(normed)

    if training and p >= 1.0:
        # torch dropout(p=1) zeroes the sublayer branch entirely.
        return x

    # ---- residual + dropout (Pallas), lane-dense & sublane-full if possible --
    ew_shape = _lane_dense_shape(r * d, r, d)
    x_e = x.reshape(ew_shape)
    s_e = sub_out.reshape(ew_shape)

    if training and p > 0.0:
        keep_prob = 1.0 - float(p)
        if dropout_key is None:
            dropout_key = jax.random.PRNGKey(0)
        if use_device_rng is None:
            use_device_rng = jax.default_backend() == "tpu"
        if use_device_rng:
            seed = jax.random.randint(
                dropout_key, (1,),
                minval=jnp.iinfo(jnp.int32).min,
                maxval=jnp.iinfo(jnp.int32).max, dtype=jnp.int32)
            out_e = residual_dropout_pallas(x_e, s_e, seed, keep_prob)
        else:
            # Bernoulli(keep_prob) mask streamed as uint8 (fallback only).
            mask = (jax.random.uniform(dropout_key, ew_shape, jnp.float32)
                    < keep_prob).astype(jnp.uint8)
            out_e = residual_dropout_mask_pallas(x_e, s_e, mask, keep_prob)
    else:
        out_e = residual_add_pallas(x_e, s_e)

    return out_e.reshape(b, s, d)


# ----------------------------- demo / checks --------------------------------


if __name__ == "__main__":
    B, S, D = 2, 8, 32
    dropout_p = 0.1
    eps = 1e-6

    root = jax.random.PRNGKey(0)
    kx, kw, kd = jax.random.split(root, 3)

    x = jax.random.normal(kx, (B, S, D), dtype=jnp.float32)
    W = jax.random.normal(kw, (D, D), dtype=jnp.float32) / jnp.sqrt(D)
    gamma = jnp.ones((D,), jnp.float32)   # a_2 init (torch.ones)
    beta = jnp.zeros((D,), jnp.float32)   # b_2 init (torch.zeros)

    # Stand-in "sublayer" with the same feature size (e.g. a tiny FFN).
    def sublayer(h):
        return jnp.maximum(h @ W, 0.0)

    # Pure-JAX reference mirroring the PyTorch module exactly.
    def ref_forward(xv):
        mean = xv.mean(-1, keepdims=True)
        std = jnp.std(xv, axis=-1, keepdims=True, ddof=1)   # torch x.std(-1)
        normed = gamma * (xv - mean) / (std + eps) + beta
        sv = sublayer(normed)
        return xv + sv, sv

    ref_out, s_ref = ref_forward(x)

    # Eval mode (dropout = identity): exact check.
    out_eval = sublayer_connection_forward(
        x, gamma, beta, sublayer, p=dropout_p, eps=eps, training=False)
    out_eval = jax.block_until_ready(out_eval)
    assert out_eval.shape == (B, S, D)
    assert jnp.allclose(out_eval, ref_out, atol=1e-5, rtol=1e-5), "eval mismatch"

    # Training mode: every element is either x (dropped) or x + s/(1-p) (kept).
    out_train = sublayer_connection_forward(
        x, gamma, beta, sublayer, p=dropout_p, eps=eps, training=True,
        dropout_key=kd)
    out_train = jax.block_until_ready(out_train)
    assert out_train.shape == (B, S, D)
    delta = out_train - x
    kept = delta != 0.0
    assert jnp.allclose(
        jnp.where(kept, delta, 0.0),
        jnp.where(kept, s_ref / (1.0 - dropout_p), 0.0),
        atol=1e-5, rtol=1e-5,
    ), "train-path dropout/scaling mismatch"

    print("KERNEL_OK")
</pallas_src>

<mosaic_0001>
module attributes {stable_mosaic.version = 11 : i64} {
  func.func @_layernorm_kernel(%arg0: i32, %arg1: memref<8x32xf32, #tpu.memory_space<vmem>>, %arg2: memref<1x32xf32, #tpu.memory_space<vmem>>, %arg3: memref<1x32xf32, #tpu.memory_space<vmem>>, %arg4: memref<8x32xf32, #tpu.memory_space<vmem>>) attributes {dimension_semantics = [#tpu.dimension_semantics<parallel>], iteration_bounds = array<i64: 2>, scalar_prefetch = 0 : i64, scratch_operands = 0 : i64, tpu.core_type = #tpu.core_type<tc>, window_params = [{transform_indices = @transform_0, window_bounds = array<i64: 8, 32>}, {pipeline_mode = #tpu.pipeline_mode<synchronous>, transform_indices = @transform_1, window_bounds = array<i64: 1, 32>}, {pipeline_mode = #tpu.pipeline_mode<synchronous>, transform_indices = @transform_2, window_bounds = array<i64: 1, 32>}, {transform_indices = @transform_3, window_bounds = array<i64: 8, 32>}]} {
    %c0 = arith.constant 0 : index
    %c0_0 = arith.constant 0 : index
    %0 = vector.load %arg1[%c0, %c0_0] : memref<8x32xf32, #tpu.memory_space<vmem>>, vector<8x32xf32>
    %cst = arith.constant dense<0.000000e+00> : vector<8xf32>
    %1 = vector.multi_reduction <add>, %0, %cst [1] : vector<8x32xf32> to vector<8xf32>
    %2 = vector.shape_cast %1 : vector<8xf32> to vector<8x1xf32>
    %cst_1 = arith.constant 3.125000e-02 : f32
    %3 = vector.broadcast %cst_1 : f32 to vector<8x1xf32>
    %4 = arith.mulf %2, %3 : vector<8x1xf32>
    %5 = arith.mulf %0, %0 : vector<8x32xf32>
    %cst_2 = arith.constant dense<0.000000e+00> : vector<8xf32>
    %6 = vector.multi_reduction <add>, %5, %cst_2 [1] : vector<8x32xf32> to vector<8xf32>
    %7 = vector.shape_cast %6 : vector<8xf32> to vector<8x1xf32>
    %cst_3 = arith.constant 3.125000e-02 : f32
    %8 = vector.broadcast %cst_3 : f32 to vector<8x1xf32>
    %9 = arith.mulf %7, %8 : vector<8x1xf32>
    %10 = arith.mulf %4, %4 : vector<8x1xf32>
    %11 = arith.subf %9, %10 : vector<8x1xf32>
    %cst_4 = arith.constant 0.000000e+00 : f32
    %12 = vector.broadcast %cst_4 : f32 to vector<8x1xf32>
    %13 = arith.maximumf %11, %12 : vector<8x1xf32>
    %cst_5 = arith.constant 1.03225803 : f32
    %14 = vector.broadcast %cst_5 : f32 to vector<8x1xf32>
    %15 = arith.mulf %13, %14 : vector<8x1xf32>
    %16 = math.sqrt %15 : vector<8x1xf32>
    %cst_6 = arith.constant 9.99999997E-7 : f32
    %17 = vector.broadcast %cst_6 : f32 to vector<8x1xf32>
    %18 = arith.addf %16, %17 : vector<8x1xf32>
    %19 = tpu.reciprocal %18 : vector<8x1xf32> -> vector<8x1xf32>
    %20 = vector.broadcast %4 : vector<8x1xf32> to vector<8x32xf32>
    %21 = arith.subf %0, %20 : vector<8x32xf32>
    %22 = vector.broadcast %19 : vector<8x1xf32> to vector<8x32xf32>
    %23 = arith.mulf %21, %22 : vector<8x32xf32>
    %c0_7 = arith.constant 0 : index
    %c0_8 = arith.constant 0 : index
    %24 = vector.load %arg2[%c0_7, %c0_8] : memref<1x32xf32, #tpu.memory_space<vmem>>, vector<1x32xf32>
    %25 = vector.broadcast %24 : vector<1x32xf32> to vector<8x32xf32>
    %26 = arith.mulf %23, %25 : vector<8x32xf32>
    %c0_9 = arith.constant 0 : index
    %c0_10 = arith.constant 0 : index
    %27 = vector.load %arg3[%c0_9, %c0_10] : memref<1x32xf32, #tpu.memory_space<vmem>>, vector<1x32xf32>
    %28 = vector.broadcast %27 : vector<1x32xf32> to vector<8x32xf32>
    %29 = arith.addf %26, %28 : vector<8x32xf32>
    %c0_11 = arith.constant 0 : index
    %c0_12 = arith.constant 0 : index
    %30 = vector.load %arg4[%c0_11, %c0_12] : memref<8x32xf32, #tpu.memory_space<vmem>>, vector<8x32xf32>
    tpu.vector_store %arg4[%c0_11, %c0_12], %29 {strides = array<i32>} : memref<8x32xf32, #tpu.memory_space<vmem>>, vector<8x32xf32>,
    return
  }
  func.func @transform_0(%arg0: i32) -> (i32, i32) {
    %c0_i32 = arith.constant 0 : i32
    %c0_i32_0 = arith.constant 0 : i32
    return %arg0, %c0_i32 : i32, i32
  }
  func.func @transform_1(%arg0: i32) -> (i32, i32) {
    %c0_i32 = arith.constant 0 : i32
    %c0_i32_0 = arith.constant 0 : i32
    %c0_i32_1 = arith.constant 0 : i32
    return %c0_i32, %c0_i32_0 : i32, i32
  }
  func.func @transform_2(%arg0: i32) -> (i32, i32) {
    %c0_i32 = arith.constant 0 : i32
    %c0_i32_0 = arith.constant 0 : i32
    %c0_i32_1 = arith.constant 0 : i32
    return %c0_i32, %c0_i32_0 : i32, i32
  }
  func.func @transform_3(%arg0: i32) -> (i32, i32) {
    %c0_i32 = arith.constant 0 : i32
    %c0_i32_0 = arith.constant 0 : i32
    return %arg0, %c0_i32 : i32, i32
  }
}

</mosaic_0001>

<llo_original>
// kernel: tpu_custom_call.1
$region0: #{tpu_custom_call.1}
  #allocation0 [shape = 'u32[]', space=smem, size = 0x4, offset = 0x4, fixed_abs, tag = 'smem constant byte address 0x4 - core index']
  #allocation1 [shape = 'u32[144,128]{1,0:T(1,128)}', space=vmem, size = 0x12000, scoped, tag = 'internal scratch']
  %s0 = inlined_call_operand.hbm [shape: f32[16,32], index: 0, kind: input, shape index: {}]
  %s1 = inlined_call_operand.vmem [shape: f32[1,32], index: 1, kind: input, shape index: {}]
  %s2 = inlined_call_operand.vmem [shape: f32[1,32], index: 2, kind: input, shape index: {}]
  %s3 = inlined_call_operand.hbm [shape: f32[16,32], index: 3, kind: output, shape index: {}]
  %s4 = sld [smem:[#allocation0]]
  $region49: #{tpu_custom_call.1} parent=0
    _
  %s6 = ssub.s32 1, %s4
  %s7 = scalar_select 0, %s6, %s4
  $region1: #{tpu_custom_call.1} parent=0
    #allocation2 [shape = 'u8[8192]{0}', space=vmem, size = 0x2000, scoped, tag = 'input window, operand 0']
    #allocation3 [shape = 's32[2]{0}', space=sflag, size = 0x8, scoped, tag = 'scoped memory for tpu_custom_call.1']
    #allocation4 [shape = 's32[2]{0}', space=sflag, size = 0x8, scoped, tag = 'scoped memory for tpu_custom_call.1']
    #allocation5 [shape = 'u8[8192]{0}', space=vmem, size = 0x2000, scoped, tag = 'output window, operand 0']
    %8 = vsyncpa [#allocation3], 0
    %s9 = scalar_lea.sflag [#allocation3], 1
    %10 = vsyncpa %s9, 0
    %11 = vsyncpa [#allocation4], 0
    %s12 = scalar_lea.sflag [#allocation4], 1
    %13 = vsyncpa %s12, 0
    loop: start=0, step=1, limit=4
    $region2: #{tpu_custom_call.1} parent=1 // loop_pre_header
      _
    $region3: #{tpu_custom_call.1} parent=1 // loop_header
      %s15 = sphi 0, %s19
      %p16 = scmp.ge.s32.totalorder %s15, 4
      %s25 = sphi 0, %s27
      %s28 = sphi 0, %s25
      %s29 = sphi 0, %s28
      %s45 = sphi 0, %s29
      %s49 = sphi 0, %s49
      %s51 = sphi 0, %s49
      %s52 = sphi 0, %s51
      %s66 = sphi 0, %s52
      %s70 = sphi 0, %s70
      %s72 = sphi 0, %s70
      %s73 = sphi 0, %s72
      %s87 = sphi 0, %s73
      %s93 = sphi 0, %s95
      %s96 = sphi 0, %s93
      %s97 = sphi 0, %s96
      %s113 = sphi 0, %s97
    $region4: #{tpu_custom_call.1} parent=1 // loop_header_branch
      %18 = sbr.rel (%p16) target = $region8
    $region5: #{tpu_custom_call.1} parent=1 // loop_body
      %s20 = ssub.s32 %s15, 1
      %s21 = ssub.s32 %s15, 2
      %s22 = sadd.s32 %s15, 1
      %s23 = ssub.s32 %s15, %s22
      %p24 = scmp.eq.s32.totalorder %s23, 0
      %s26 = sadd.s32 %s25, 1
      %s27 = scalar_select %p24, %s25, %s26
      %p30 = pneg %p24
      %p31 = scmp.eq.s32.totalorder %s15, 1
      %p32 = por %p30, %p31
      %p33 = scmp.ne.s32.totalorder %s25, %s28
      %p34 = scmp.eq.s32.totalorder %s15, 0
      %p35 = por %p33, %p34
      %p36 = scmp.ne.s32.totalorder %s25, %s28
      %p37 = scmp.eq.s32.totalorder %s20, 1
      %p38 = por %p36, %p37
      %p39 = scmp.ne.s32.totalorder %s28, %s29
      %p40 = scmp.eq.s32.totalorder %s20, 0
      %p41 = por %p39, %p40
      %p42 = scmp.ne.s32.totalorder %s28, %s29
      %p43 = scmp.eq.s32.totalorder %s21, 1
      %p44 = por %p42, %p43
      %p46 = scmp.ne.s32.totalorder %s29, %s45
      %p47 = scmp.eq.s32.totalorder %s21, 0
      %p48 = por %p46, %p47
      %s50 = sadd.s32 %s49, 1
      %p53 = scmp.eq.s32.totalorder %s15, 1
      %p54 = scmp.ne.s32.totalorder %s49, %s51
      %p55 = scmp.eq.s32.totalorder %s15, 0
      %p56 = por %p54, %p55
      %p57 = scmp.ne.s32.totalorder %s49, %s51
      %p58 = scmp.eq.s32.totalorder %s20, 1
      %p59 = por %p57, %p58
      %p60 = scmp.ne.s32.totalorder %s51, %s52
      %p61 = scmp.eq.s32.totalorder %s20, 0
      %p62 = por %p60, %p61
      %p63 = scmp.ne.s32.totalorder %s51, %s52
      %p64 = scmp.eq.s32.totalorder %s21, 1
      %p65 = por %p63, %p64
      %p67 = scmp.ne.s32.totalorder %s52, %s66
      %p68 = scmp.eq.s32.totalorder %s21, 0
      %p69 = por %p67, %p68
      %s71 = sadd.s32 %s70, 1
      %p74 = scmp.eq.s32.totalorder %s15, 1
      %p75 = scmp.ne.s32.totalorder %s70, %s72
      %p76 = scmp.eq.s32.totalorder %s15, 0
      %p77 = por %p75, %p76
      %p78 = scmp.ne.s32.totalorder %s70, %s72
      %p79 = scmp.eq.s32.totalorder %s20, 1
      %p80 = por %p78, %p79
      %p81 = scmp.ne.s32.totalorder %s72, %s73
      %p82 = scmp.eq.s32.totalorder %s20, 0
      %p83 = por %p81, %p82
      %p84 = scmp.ne.s32.totalorder %s72, %s73
      %p85 = scmp.eq.s32.totalorder %s21, 1
      %p86 = por %p84, %p85
      %p88 = scmp.ne.s32.totalorder %s73, %s87
      %p89 = scmp.eq.s32.totalorder %s21, 0
      %p90 = por %p88, %p89
      %s91 = ssub.s32 %s15, %s22
      %p92 = scmp.eq.s32.totalorder %s91, 0
      %s94 = sadd.s32 %s93, 1
      %s95 = scalar_select %p92, %s93, %s94
      %p98 = pneg %p92
      %p99 = scmp.eq.s32.totalorder %s15, 1
      %p100 = por %p98, %p99
      %p101 = scmp.ne.s32.totalorder %s93, %s96
      %p102 = scmp.eq.s32.totalorder %s15, 0
      %p103 = por %p101, %p102
      %p104 = scmp.ne.s32.totalorder %s93, %s96
      %p105 = scmp.eq.s32.totalorder %s20, 1
      %p106 = por %p104, %p105
      %p107 = scmp.ne.s32.totalorder %s96, %s97
      %p108 = scmp.eq.s32.totalorder %s20, 0
      %p109 = por %p107, %p108
      %p110 = scmp.ne.s32.totalorder %s96, %s97
      %p111 = scmp.eq.s32.totalorder %s21, 1
      %p112 = por %p110, %p111
      %p114 = scmp.ne.s32.totalorder %s97, %s113
      %p115 = scmp.eq.s32.totalorder %s21, 0
      %p116 = por %p114, %p115
      %p117 = scmp.le.s32.totalorder 1, %s15
      %p118 = scmp.lt.s32.totalorder %s15, 3
      %p119 = pnand %p117, %p118
      %p120 = pneg %p119
      // Predicated region
      $region9: #{tpu_custom_call.1} parent=5 // pred_check
        _
      $region10: #{tpu_custom_call.1} parent=5 // pred_check_branch
        %122 = sbr.rel (%p119) target = $region12
      $region11: #{tpu_custom_call.1} parent=5 // pred_region
        %s123 = ssub.s32 %s15, 1
        // Predicated region
        $region13: #{tpu_custom_call.1} parent=11 // pred_check
          %p124 = pneg %p62
        $region14: #{tpu_custom_call.1} parent=11 // pred_check_branch
          %126 = sbr.rel (%p124) target = $region16
        $region15: #{tpu_custom_call.1} parent=11 // pred_region
          _
        $region16: #{tpu_custom_call.1} parent=11 // pred_fallthru
          _
        // Predicated region
        $region17: #{tpu_custom_call.1} parent=11 // pred_check
          %p127 = pneg %p83
        $region18: #{tpu_custom_call.1} parent=11 // pred_check_branch
          %129 = sbr.rel (%p127) target = $region20
        $region19: #{tpu_custom_call.1} parent=11 // pred_region
          _
        $region20: #{tpu_custom_call.1} parent=11 // pred_fallthru
          _
      $region12: #{tpu_custom_call.1} parent=5 // pred_fallthru
        _
      %p130 = scmp.lt.s32.totalorder %s15, 2
      // Predicated region
      $region21: #{tpu_custom_call.1} parent=5 // pred_check
        %p131 = pneg %p130
      $region22: #{tpu_custom_call.1} parent=5 // pred_check_branch
        %133 = sbr.rel (%p131) target = $region24
      $region23: #{tpu_custom_call.1} parent=5 // pred_region
        // Predicated region
        $region25: #{tpu_custom_call.1} parent=23 // pred_check
          %p134 = pneg %p35
        $region26: #{tpu_custom_call.1} parent=23 // pred_check_branch
          %136 = sbr.rel (%p134) target = $region28
        $region27: #{tpu_custom_call.1} parent=23 // pred_region
          %s137 = sand.u32 %s25, 1
          %s138 = scalar_lea.sflag [#allocation3], %s137
          %s139 = sand.u32 %s25, 1
          %s140 = smul.addr %s139, 8
          %s141 = scalar_lea.vmem [#allocation2], %s140
          %s143 = ssub.s32 128, 128
          %144 = vsyncadd %s138, %s143
          %s145 = smul.addr %s15, 128
          %s146 = scalar_lea.hbm %s0, %s145
          %s148 = sshll.u32 %s141, 4
          %s149 = int_to_ptr.vmem [resolvable:$true] %s148
          %151 = dma.hbm_to_vmem [thread:$0]  %s146, 128, %s149, %s138
        $region28: #{tpu_custom_call.1} parent=23 // pred_fallthru
          _
      $region24: #{tpu_custom_call.1} parent=5 // pred_fallthru
        _
      %p152 = scmp.le.s32.totalorder 1, %s15
      %p153 = scmp.lt.s32.totalorder %s15, 3
      %p154 = pnand %p152, %p153
      %p155 = pneg %p154
      // Predicated region
      $region29: #{tpu_custom_call.1} parent=5 // pred_check
        _
      $region30: #{tpu_custom_call.1} parent=5 // pred_check_branch
        %157 = sbr.rel (%p154) target = $region32
      $region31: #{tpu_custom_call.1} parent=5 // pred_region
        %s158 = ssub.s32 %s15, 1
        %s159 = sand.u32 %s28, 1
        %s160 = scalar_lea.sflag [#allocation3], %s159
        %s161 = sand.u32 %s28, 1
        %s162 = smul.addr %s161, 8
        %s163 = scalar_lea.vmem [#allocation2], %s162
        // Predicated region
        $region33: #{tpu_custom_call.1} parent=31 // pred_check
          %p164 = pneg %p41
        $region34: #{tpu_custom_call.1} parent=31 // pred_check_branch
          %166 = sbr.rel (%p164) target = $region36
        $region35: #{tpu_custom_call.1} parent=31 // pred_region
          %167 = dma.done %s160, 128
        $region36: #{tpu_custom_call.1} parent=31 // pred_fallthru
          _
        %s168 = sand.u32 %s28, 1
        %s169 = scalar_lea.sflag [#allocation3], %s168
        %s170 = sand.u32 %s28, 1
        %s171 = smul.addr %s170, 8
        %s172 = scalar_lea.vmem [#allocation2], %s171
        %p173 = pneg %p41
        %p174 = pneg %p38
        %p175 = pneg %p62
        %p176 = pneg %p59
        %p177 = pneg %p83
        %p178 = pneg %p80
        %p179 = pneg %p109
        %p180 = pneg %p106
        %s181 = sand.u32 %s96, 1
        %s182 = scalar_lea.sflag [#allocation4], %s181
        %s183 = sand.u32 %s96, 1
        %s184 = smul.addr %s183, 8
        %s185 = scalar_lea.vmem [#allocation5], %s184
        %v186 = vld [vmem:[%s163] sm:$0xff]
        %vm187 = vcmask 261120
        %v188 = vsel %vm187, %v186, 0.0
        %189 = vadd.xlane.f32.xlu0 %v188
        %v190 = vpop.xlane.xlu0 %189
        %v191 = vmul.f32 %v190, 0.03125
        %v192 = vmul.f32 %v186, %v186
        %v193 = vsel %vm187, %v192, 0.0
        %194 = vadd.xlane.f32.xlu0 %v193
        %v195 = vpop.xlane.xlu0 %194
        %v196 = vmul.f32 %v195, 0.03125
        %v197 = vmul.f32 %v191, %v191
        %v198 = vsub.f32 %v196, %v197
        %v199 = vmax.f32 %v198, 0.0
        %v200 = vmul.f32 %v199, 1.032258
        %v201 = vrsqrt.pop %v200
        %v202 = vmul.f32 %v200, %v201
        %vm203 = vcmp.eq.f32.partialorder %v200, inf
        %v204 = vsel %vm203, %v200, %v202
        %vm205 = vcmp.eq.f32.partialorder %v200, 0.0
        %v206 = vand.u32 %v200, 2147483648
        %v207 = vsel %vm205, %v206, %v204
        %v208 = vadd.f32 %v207, 1e-06
        %v209 = vrcp.pop %v208
        %v210 = vsub.f32 %v186, %v191
        %v211 = vmul.f32 %v210, %v209
        %v212 = vld [vmem:[%s1] sm:$0x1]
        %v214 = vlaneseq
        %v215 = vshrl.u32 %v214, 7
        %v216 = vsub.s32 0, %v215
        %v217 = vrot.slane %v212, %v216
        %v219 = vmul.f32 %v211, %v217
        %v220 = vld [vmem:[%s2] sm:$0x1]
        %v222 = vlaneseq
        %v223 = vshrl.u32 %v222, 7
        %v224 = vsub.s32 0, %v223
        %v225 = vrot.slane %v220, %v224
        %v227 = vadd.f32 %v219, %v225
        %228 = vst.msk [vmem:[%s185] sm:$0xff] %vm187, %v227
        %s229 = sand.u32 %s96, 1
        %s230 = scalar_lea.sflag [#allocation4], %s229
        %s231 = sand.u32 %s96, 1
        %s232 = smul.addr %s231, 8
        %s233 = scalar_lea.vmem [#allocation5], %s232
        // Predicated region
        $region37: #{tpu_custom_call.1} parent=31 // pred_check
          %p234 = pneg %p106
        $region38: #{tpu_custom_call.1} parent=31 // pred_check_branch
          %236 = sbr.rel (%p234) target = $region40
        $region39: #{tpu_custom_call.1} parent=31 // pred_region
          %s238 = ssub.s32 128, 128
          %239 = vsyncadd %s230, %s238
          %s240 = smul.addr %s20, 128
          %s241 = scalar_lea.hbm %s3, %s240
          %s243 = sshll.u32 %s233, 4
          %s244 = int_to_ptr.vmem [resolvable:$true] %s243
          %246 = dma.vmem_to_hbm [thread:$0]  %s244, 128, %s241, %s230
        $region40: #{tpu_custom_call.1} parent=31 // pred_fallthru
          _
      $region32: #{tpu_custom_call.1} parent=5 // pred_fallthru
        _
      %p247 = scmp.le.s32.totalorder 2, %s15
      // Predicated region
      $region41: #{tpu_custom_call.1} parent=5 // pred_check
        %p248 = pneg %p247
      $region42: #{tpu_custom_call.1} parent=5 // pred_check_branch
        %250 = sbr.rel (%p248) target = $region44
      $region43: #{tpu_custom_call.1} parent=5 // pred_region
        %s251 = ssub.s32 %s15, 2
        // Predicated region
        $region45: #{tpu_custom_call.1} parent=43 // pred_check
          %p252 = pneg %p112
        $region46: #{tpu_custom_call.1} parent=43 // pred_check_branch
          %254 = sbr.rel (%p252) target = $region48
        $region47: #{tpu_custom_call.1} parent=43 // pred_region
          %s255 = sand.u32 %s97, 1
          %s256 = scalar_lea.sflag [#allocation4], %s255
          %s257 = sand.u32 %s97, 1
          %s258 = smul.addr %s257, 8
          %s259 = scalar_lea.vmem [#allocation5], %s258
          %260 = dma.done %s256, 128
        $region48: #{tpu_custom_call.1} parent=43 // pred_fallthru
          _
      $region44: #{tpu_custom_call.1} parent=5 // pred_fallthru
        _
    $region6: #{tpu_custom_call.1} parent=1 // loop_footer
      %s19 = sadd.s32 1, %s15
    $region7: #{tpu_custom_call.1} parent=1 // loop_footer_branch
      %14 = sbr.rel target = $region3
    $region8: #{tpu_custom_call.1} parent=1 // loop_exit
      _
    %261 = vsyncpa [#allocation3], 1
    %s262 = scalar_lea.sflag [#allocation3], 1
    %263 = vsyncpa %s262, 1
    %264 = vsyncpa [#allocation4], 1
    %s265 = scalar_lea.sflag [#allocation4], 1
    %266 = vsyncpa %s265, 1

</llo_original>
